<compile_context>
chip_gen: v5e
topology: v5e:2x2
jax: 0.10.0
libtpu: 0.0.40
codegen_flags: <defaults>
</compile_context>

<pallas_src>
import functools

import jax
import jax.numpy as jnp
from jax.experimental import pallas as pl
from jax.experimental.pallas import tpu as pltpu

_MiB = 1024 * 1024

# Per-pass block-size targets (bytes of one (nb, C, t_hw) input block).
#   Fused / Pass-2 blocks are double-buffered for BOTH input and output
#   (~4x block steady state); Pass-1 streams only the input (~2x block).
_FUSED_BLOCK_TARGET = 4 * _MiB
_FUSED_MAX_SAMPLE_BYTES = 4 * _MiB      # above this, one (C, HW) slab -> fallback
_PASS1_BLOCK_TARGET = 8 * _MiB
_PASS2_BLOCK_TARGET = 4 * _MiB
_VMEM_LIMIT_BYTES = 48 * _MiB           # < v7x 64 MiB physical; << v5e/v6e 128 MiB


def _sigmoid(z):
    # Numerically clean sigmoid via EUP tanh (no inf intermediate).
    return 0.5 * jnp.tanh(0.5 * z) + 0.5


def _excite(pooled, w1_ref, b1_ref, w2_ref, b2_ref):
    """Tiny squeeze-excite MLP on a (nb, C) pooled vector. Kept off the MXU."""
    # h[n, r] = relu(sum_c w1[r, c] * pooled[n, c] + b1[r])
    h = jnp.sum(w1_ref[...][None, :, :] * pooled[:, None, :], axis=-1)
    h = jnp.maximum(h + b1_ref[...], 0.0)                    # (nb, Cr)
    # y[n, c] = sigmoid(sum_r w2[c, r] * h[n, r] + b2[c])
    y = jnp.sum(w2_ref[...][None, :, :] * h[:, None, :], axis=-1)
    return _sigmoid(y + b2_ref[...])                          # (nb, C)


# ----------------------------- fused kernel ---------------------------------
def _fused_kernel(x_ref, w1_ref, b1_ref, w2_ref, b2_ref, o_ref, *, hw_total):
    # Whole (nb, C, HW) slab is resident: pool + MLP + scale in one pass.
    pooled = jnp.sum(x_ref[...].astype(jnp.float32), axis=-1) * (1.0 / hw_total)
    y = _excite(pooled, w1_ref, b1_ref, w2_ref, b2_ref)       # (nb, C)
    # Re-read the block from VMEM for the rescale (avoids keeping a large
    # loaded value live across the MLP).
    o_ref[...] = (x_ref[...].astype(jnp.float32) * y[:, :, None]).astype(o_ref.dtype)


# ------------------------- two-pass fallback kernels -------------------------
def _pool_excite_kernel(x_ref, w1_ref, b1_ref, w2_ref, b2_ref, y_ref, acc_ref,
                        *, hw_total):
    # x_ref block: (nb, C, t_hw); spatial reduction is grid axis 1 (last).
    k = pl.program_id(1)

    @pl.when(k == 0)
    def _():
        acc_ref[...] = jnp.zeros_like(acc_ref)

    # Lane-resident partial sums: pure vadds in the steady-state loop.
    nb, c, t_hw = x_ref.shape
    acc_ref[...] += jnp.sum(
        x_ref[...].astype(jnp.float32).reshape(nb, c, t_hw // 128, 128), axis=2)

    @pl.when(k == pl.num_programs(1) - 1)
    def _():
        # Single cross-lane reduce + tiny MLP, once per batch tile.
        pooled = jnp.sum(acc_ref[...], axis=-1) * (1.0 / hw_total)   # (nb, C)
        y = _excite(pooled, w1_ref, b1_ref, w2_ref, b2_ref)
        y_ref[...] = y[:, :, None]                                   # (nb, C, 1)


def _scale_kernel(x_ref, y_ref, o_ref):
    # (nb, C, t_hw) * (nb, C, 1) -> (nb, C, t_hw); lane-dense output tile.
    o_ref[...] = (x_ref[...] * y_ref[...]).astype(o_ref.dtype)


# ----------------------------- tile selection --------------------------------
def _choose_batch_tile(N, sample_block_bytes, target_block_bytes):
    """Largest power-of-2 batch tile dividing N, keeping the batch grid >= 2
    (so v7x's two TensorCores both get work) and the block under target."""
    nb = 1
    max_nb = max(N // 2, 1)
    while (N % (nb * 2) == 0 and nb * 2 <= max_nb
           and (nb * 2) * sample_block_bytes <= target_block_bytes):
        nb *= 2
    return nb


def _choose_tiles(N, C, HWp, itemsize, target_block_bytes):
    """Pick (batch_tile, spatial_tile) for the two-pass path.

    t_hw is a multiple of 128 dividing HWp (HWp is already 128-aligned via
    padding), grown first; nb grows only with leftover budget and never
    collapses the batch grid axis below 2.
    """
    t_hw = 128
    while (HWp % (t_hw * 2) == 0
           and C * (t_hw * 2) * itemsize <= target_block_bytes):
        t_hw *= 2
    nb = _choose_batch_tile(N, C * t_hw * itemsize, target_block_bytes)
    return nb, t_hw


# --------------------------------- wrapper -----------------------------------
def ca_layer(x_nchw, w1, b1, w2, b2, *, force_two_pass=False,
             pass1_block_target=_PASS1_BLOCK_TARGET,
             pass2_block_target=_PASS2_BLOCK_TARGET):
    """x_nchw: (N, C, H, W). w1: (C//r, C), b1: (C//r,), w2: (C, C//r), b2: (C,)."""
    N, C, H, W = x_nchw.shape
    Cr = w1.shape[0]
    HW = H * W
    itemsize = jnp.dtype(x_nchw.dtype).itemsize

    x = x_nchw.reshape(N, C, HW)
    b1r = b1.reshape(1, Cr)
    b2r = b2.reshape(1, C)

    sample_bytes = C * HW * itemsize
    use_fused = (not force_two_pass) and sample_bytes <= _FUSED_MAX_SAMPLE_BYTES

    if use_fused:
        # ---- Fused: pool + excite + scale, x read from HBM exactly once ----
        nb = _choose_batch_tile(N, sample_bytes, _FUSED_BLOCK_TARGET)
        out = pl.pallas_call(
            functools.partial(_fused_kernel, hw_total=HW),
            out_shape=jax.ShapeDtypeStruct((N, C, HW), x.dtype),
            grid_spec=pltpu.PrefetchScalarGridSpec(
                num_scalar_prefetch=0,
                grid=(N // nb,),
                in_specs=[
                    pl.BlockSpec((nb, C, HW), lambda n: (n, 0, 0)),   # x
                    pl.BlockSpec((Cr, C), lambda n: (0, 0)),          # w1
                    pl.BlockSpec((1, Cr), lambda n: (0, 0)),          # b1
                    pl.BlockSpec((C, Cr), lambda n: (0, 0)),          # w2
                    pl.BlockSpec((1, C), lambda n: (0, 0)),           # b2
                ],
                out_specs=pl.BlockSpec((nb, C, HW), lambda n: (n, 0, 0)),
            ),
            compiler_params=pltpu.CompilerParams(
                dimension_semantics=("parallel",),
                vmem_limit_bytes=_VMEM_LIMIT_BYTES),
        )(x, w1, b1r, w2, b2r)
        return out.reshape(N, C, H, W)

    # ---- Fallback: two spatially-tiled passes (constant VMEM footprint) ----
    # Pad HW to a multiple of 128 so every spatial tile is lane-dense
    # (unmasked vst); zero padding doesn't perturb the pooled sum.
    HWp = ((HW + 127) // 128) * 128
    x_p = x if HWp == HW else jnp.pad(x, ((0, 0), (0, 0), (0, HWp - HW)))

    nb1, t_hw1 = _choose_tiles(N, C, HWp, itemsize, pass1_block_target)
    nb2, t_hw2 = _choose_tiles(N, C, HWp, itemsize, pass2_block_target)

    # Pass 1: global average pool + squeeze-excite -> y (N, C, 1)
    y = pl.pallas_call(
        functools.partial(_pool_excite_kernel, hw_total=HW),
        out_shape=jax.ShapeDtypeStruct((N, C, 1), jnp.float32),
        grid_spec=pltpu.PrefetchScalarGridSpec(
            num_scalar_prefetch=0,
            grid=(N // nb1, HWp // t_hw1),
            in_specs=[
                pl.BlockSpec((nb1, C, t_hw1), lambda n, k: (n, 0, k)),  # x
                pl.BlockSpec((Cr, C), lambda n, k: (0, 0)),             # w1
                pl.BlockSpec((1, Cr), lambda n, k: (0, 0)),             # b1
                pl.BlockSpec((C, Cr), lambda n, k: (0, 0)),             # w2
                pl.BlockSpec((1, C), lambda n, k: (0, 0)),              # b2
            ],
            out_specs=pl.BlockSpec((nb1, C, 1), lambda n, k: (n, 0, 0)),
            scratch_shapes=[pltpu.VMEM((nb1, C, 128), jnp.float32)],
        ),
        compiler_params=pltpu.CompilerParams(
            dimension_semantics=("parallel", "arbitrary"),
            vmem_limit_bytes=_VMEM_LIMIT_BYTES),
    )(x_p, w1, b1r, w2, b2r)

    # Pass 2: channel-wise rescale, tiled over batch and spatial.
    out_p = pl.pallas_call(
        _scale_kernel,
        out_shape=jax.ShapeDtypeStruct((N, C, HWp), x.dtype),
        grid_spec=pltpu.PrefetchScalarGridSpec(
            num_scalar_prefetch=0,
            grid=(N // nb2, HWp // t_hw2),
            in_specs=[
                pl.BlockSpec((nb2, C, t_hw2), lambda n, k: (n, 0, k)),  # x
                pl.BlockSpec((nb2, C, 1), lambda n, k: (n, 0, 0)),      # y
            ],
            out_specs=pl.BlockSpec((nb2, C, t_hw2), lambda n, k: (n, 0, k)),
        ),
        compiler_params=pltpu.CompilerParams(
            dimension_semantics=("parallel", "parallel"),
            vmem_limit_bytes=_VMEM_LIMIT_BYTES),
    )(x_p, y)

    out = out_p if HWp == HW else out_p[:, :, :HW]
    return out.reshape(N, C, H, W)


def ca_layer_ref(x, w1, b1, w2, b2):
    # Pure-JAX reference mirroring the PyTorch module.
    y = jnp.mean(x, axis=(2, 3), keepdims=True)                      # (N,C,1,1)
    y = jnp.einsum('rc,ncij->nrij', w1, y) + b1[None, :, None, None]
    y = jnp.maximum(y, 0.0)
    y = jnp.einsum('cr,nrij->ncij', w2, y) + b2[None, :, None, None]
    y = jax.nn.sigmoid(y)
    return x * y


if __name__ == "__main__":
    key = jax.random.PRNGKey(0)

    def make_inputs(k, N, C, H, W, reduction=16):
        Cr = max(C // reduction, 1)
        kx, k1, kb1, k2, kb2 = jax.random.split(k, 5)
        x = jax.random.normal(kx, (N, C, H, W), dtype=jnp.float32)
        w1 = jax.random.normal(k1, (Cr, C), dtype=jnp.float32) * 0.1
        b1 = jax.random.normal(kb1, (Cr,), dtype=jnp.float32) * 0.1
        w2 = jax.random.normal(k2, (C, Cr), dtype=jnp.float32) * 0.1
        b2 = jax.random.normal(kb2, (C,), dtype=jnp.float32) * 0.1
        return x, w1, b1, w2, b2

    # Covers: fused path (aligned + non-128-aligned HW) and the two-pass
    # fallback (multi-step spatial accumulation + HW zero-padding).
    cases = [
        ((2, 32, 16, 16), {}),
        ((2, 32, 12, 12), {}),
        ((2, 32, 16, 16), dict(force_two_pass=True,
                               pass1_block_target=16 * 1024,
                               pass2_block_target=16 * 1024)),
        ((2, 32, 12, 12), dict(force_two_pass=True,
                               pass1_block_target=16 * 1024,
                               pass2_block_target=16 * 1024)),
    ]

    for i, ((N, C, H, W), kwargs) in enumerate(cases):
        key, sub = jax.random.split(key)
        x, w1, b1, w2, b2 = make_inputs(sub, N, C, H, W)
        out = jax.block_until_ready(ca_layer(x, w1, b1, w2, b2, **kwargs))
        ref = ca_layer_ref(x, w1, b1, w2, b2)
        assert out.shape == (N, C, H, W), f"case {i}: bad shape {out.shape}"
        assert jnp.allclose(out, ref, atol=1e-5, rtol=1e-5), f"case {i}: mismatch"

    print("KERNEL_OK")
</pallas_src>

<mosaic_0001>
module attributes {stable_mosaic.version = 11 : i64} {
  func.func @_fused_kernel(%arg0: i32, %arg1: memref<1x32x256xf32, #tpu.memory_space<vmem>>, %arg2: memref<2x32xf32, #tpu.memory_space<vmem>>, %arg3: memref<1x2xf32, #tpu.memory_space<vmem>>, %arg4: memref<32x2xf32, #tpu.memory_space<vmem>>, %arg5: memref<1x32xf32, #tpu.memory_space<vmem>>, %arg6: memref<1x32x256xf32, #tpu.memory_space<vmem>>) attributes {dimension_semantics = [#tpu.dimension_semantics<parallel>], iteration_bounds = array<i64: 2>, scalar_prefetch = 0 : i64, scratch_operands = 0 : i64, tpu.core_type = #tpu.core_type<tc>, window_params = [{transform_indices = @transform_0, window_bounds = array<i64: 1, 32, 256>}, {pipeline_mode = #tpu.pipeline_mode<synchronous>, transform_indices = @transform_1, window_bounds = array<i64: 2, 32>}, {pipeline_mode = #tpu.pipeline_mode<synchronous>, transform_indices = @transform_2, window_bounds = array<i64: 1, 2>}, {pipeline_mode = #tpu.pipeline_mode<synchronous>, transform_indices = @transform_3, window_bounds = array<i64: 32, 2>}, {pipeline_mode = #tpu.pipeline_mode<synchronous>, transform_indices = @transform_4, window_bounds = array<i64: 1, 32>}, {transform_indices = @transform_5, window_bounds = array<i64: 1, 32, 256>}]} {
    %c0 = arith.constant 0 : index
    %c0_0 = arith.constant 0 : index
    %c0_1 = arith.constant 0 : index
    %0 = vector.load %arg1[%c0, %c0_0, %c0_1] : memref<1x32x256xf32, #tpu.memory_space<vmem>>, vector<1x32x256xf32>
    %cst = arith.constant dense<0.000000e+00> : vector<1x32xf32>
    %1 = vector.multi_reduction <add>, %0, %cst [2] : vector<1x32x256xf32> to vector<1x32xf32>
    %cst_2 = arith.constant 3.906250e-03 : f32
    %2 = vector.broadcast %cst_2 : f32 to vector<1x32xf32>
    %3 = arith.mulf %1, %2 : vector<1x32xf32>
    %c0_3 = arith.constant 0 : index
    %c0_4 = arith.constant 0 : index
    %4 = vector.load %arg2[%c0_3, %c0_4] : memref<2x32xf32, #tpu.memory_space<vmem>>, vector<2x32xf32>
    %5 = vector.shape_cast %4 : vector<2x32xf32> to vector<1x2x32xf32>
    %6 = vector.shape_cast %3 : vector<1x32xf32> to vector<1x1x32xf32>
    %7 = vector.broadcast %6 : vector<1x1x32xf32> to vector<1x2x32xf32>
    %8 = arith.mulf %5, %7 : vector<1x2x32xf32>
    %cst_5 = arith.constant dense<0.000000e+00> : vector<1x2xf32>
    %9 = vector.multi_reduction <add>, %8, %cst_5 [2] : vector<1x2x32xf32> to vector<1x2xf32>
    %c0_6 = arith.constant 0 : index
    %c0_7 = arith.constant 0 : index
    %10 = vector.load %arg3[%c0_6, %c0_7] : memref<1x2xf32, #tpu.memory_space<vmem>>, vector<1x2xf32>
    %11 = arith.addf %9, %10 : vector<1x2xf32>
    %cst_8 = arith.constant 0.000000e+00 : f32
    %12 = vector.broadcast %cst_8 : f32 to vector<1x2xf32>
    %13 = arith.maximumf %11, %12 : vector<1x2xf32>
    %c0_9 = arith.constant 0 : index
    %c0_10 = arith.constant 0 : index
    %14 = vector.load %arg4[%c0_9, %c0_10] : memref<32x2xf32, #tpu.memory_space<vmem>>, vector<32x2xf32>
    %15 = vector.shape_cast %14 : vector<32x2xf32> to vector<1x32x2xf32>
    %16 = vector.shape_cast %13 : vector<1x2xf32> to vector<1x1x2xf32>
    %17 = vector.broadcast %16 : vector<1x1x2xf32> to vector<1x32x2xf32>
    %18 = arith.mulf %15, %17 : vector<1x32x2xf32>
    %cst_11 = arith.constant dense<0.000000e+00> : vector<1x32xf32>
    %19 = vector.multi_reduction <add>, %18, %cst_11 [2] : vector<1x32x2xf32> to vector<1x32xf32>
    %c0_12 = arith.constant 0 : index
    %c0_13 = arith.constant 0 : index
    %20 = vector.load %arg5[%c0_12, %c0_13] : memref<1x32xf32, #tpu.memory_space<vmem>>, vector<1x32xf32>
    %21 = arith.addf %19, %20 : vector<1x32xf32>
    %cst_14 = arith.constant 5.000000e-01 : f32
    %22 = vector.broadcast %cst_14 : f32 to vector<1x32xf32>
    %23 = arith.mulf %22, %21 : vector<1x32xf32>
    %24 = math.tanh %23 : vector<1x32xf32>
    %cst_15 = arith.constant 5.000000e-01 : f32
    %25 = vector.broadcast %cst_15 : f32 to vector<1x32xf32>
    %26 = arith.mulf %25, %24 : vector<1x32xf32>
    %cst_16 = arith.constant 5.000000e-01 : f32
    %27 = vector.broadcast %cst_16 : f32 to vector<1x32xf32>
    %28 = arith.addf %26, %27 : vector<1x32xf32>
    %c0_17 = arith.constant 0 : index
    %c0_18 = arith.constant 0 : index
    %c0_19 = arith.constant 0 : index
    %29 = vector.load %arg1[%c0_17, %c0_18, %c0_19] : memref<1x32x256xf32, #tpu.memory_space<vmem>>, vector<1x32x256xf32>
    %30 = vector.shape_cast %28 : vector<1x32xf32> to vector<1x32x1xf32>
    %31 = vector.broadcast %30 : vector<1x32x1xf32> to vector<1x32x256xf32>
    %32 = arith.mulf %29, %31 : vector<1x32x256xf32>
    %c0_20 = arith.constant 0 : index
    %c0_21 = arith.constant 0 : index
    %c0_22 = arith.constant 0 : index
    %33 = vector.load %arg6[%c0_20, %c0_21, %c0_22] : memref<1x32x256xf32, #tpu.memory_space<vmem>>, vector<1x32x256xf32>
    tpu.vector_store %arg6[%c0_20, %c0_21, %c0_22], %32 {strides = array<i32>} : memref<1x32x256xf32, #tpu.memory_space<vmem>>, vector<1x32x256xf32>,
    return
  }
  func.func @transform_0(%arg0: i32) -> (i32, i32, i32) {
    %c0_i32 = arith.constant 0 : i32
    %c0_i32_0 = arith.constant 0 : i32
    %c0_i32_1 = arith.constant 0 : i32
    return %arg0, %c0_i32, %c0_i32_0 : i32, i32, i32
  }
  func.func @transform_1(%arg0: i32) -> (i32, i32) {
    %c0_i32 = arith.constant 0 : i32
    %c0_i32_0 = arith.constant 0 : i32
    %c0_i32_1 = arith.constant 0 : i32
    return %c0_i32, %c0_i32_0 : i32, i32
  }
  func.func @transform_2(%arg0: i32) -> (i32, i32) {
    %c0_i32 = arith.constant 0 : i32
    %c0_i32_0 = arith.constant 0 : i32
    %c0_i32_1 = arith.constant 0 : i32
    return %c0_i32, %c0_i32_0 : i32, i32
  }
  func.func @transform_3(%arg0: i32) -> (i32, i32) {
    %c0_i32 = arith.constant 0 : i32
    %c0_i32_0 = arith.constant 0 : i32
    %c0_i32_1 = arith.constant 0 : i32
    return %c0_i32, %c0_i32_0 : i32, i32
  }
  func.func @transform_4(%arg0: i32) -> (i32, i32) {
    %c0_i32 = arith.constant 0 : i32
    %c0_i32_0 = arith.constant 0 : i32
    %c0_i32_1 = arith.constant 0 : i32
    return %c0_i32, %c0_i32_0 : i32, i32
  }
  func.func @transform_5(%arg0: i32) -> (i32, i32, i32) {
    %c0_i32 = arith.constant 0 : i32
    %c0_i32_0 = arith.constant 0 : i32
    %c0_i32_1 = arith.constant 0 : i32
    return %arg0, %c0_i32, %c0_i32_0 : i32, i32, i32
  }
}

</mosaic_0001>

<llo_original>
// kernel: tpu_custom_call.1
$region0: #{tpu_custom_call.1}
  #allocation0 [shape = 'u32[]', space=smem, size = 0x4, offset = 0x4, fixed_abs, tag = 'smem constant byte address 0x4 - core index']
  #allocation1 [shape = 'u32[72,128]{1,0:T(1,128)}', space=vmem, size = 0x9000, scoped, tag = 'internal scratch']
  %s0 = inlined_call_operand.hbm [shape: f32[2,32,256], index: 0, kind: input, shape index: {}]
  %s1 = inlined_call_operand.vmem [shape: f32[2,32], index: 1, kind: input, shape index: {}]
  %s2 = inlined_call_operand.vmem [shape: f32[1,2], index: 2, kind: input, shape index: {}]
  %s3 = inlined_call_operand.vmem [shape: f32[32,2], index: 3, kind: input, shape index: {}]
  %s4 = inlined_call_operand.vmem [shape: f32[1,32], index: 4, kind: input, shape index: {}]
  %s5 = inlined_call_operand.hbm [shape: f32[2,32,256], index: 5, kind: output, shape index: {}]
  %s6 = sld [smem:[#allocation0]]
  $region57: #{tpu_custom_call.1} parent=0
    _
  %s8 = ssub.s32 1, %s6
  %s9 = scalar_select 0, %s8, %s6
  $region1: #{tpu_custom_call.1} parent=0
    #allocation2 [shape = 'u8[65536]{0}', space=vmem, size = 0x10000, scoped, tag = 'input window, operand 0']
    #allocation3 [shape = 's32[2]{0}', space=sflag, size = 0x8, scoped, tag = 'scoped memory for tpu_custom_call.1']
    #allocation4 [shape = 's32[2]{0}', space=sflag, size = 0x8, scoped, tag = 'scoped memory for tpu_custom_call.1']
    #allocation5 [shape = 'u8[65536]{0}', space=vmem, size = 0x10000, scoped, tag = 'output window, operand 0']
    %10 = vsyncpa [#allocation3], 0
    %s11 = scalar_lea.sflag [#allocation3], 1
    %12 = vsyncpa %s11, 0
    %13 = vsyncpa [#allocation4], 0
    %s14 = scalar_lea.sflag [#allocation4], 1
    %15 = vsyncpa %s14, 0
    loop: start=0, step=1, limit=4
    $region2: #{tpu_custom_call.1} parent=1 // loop_pre_header
      _
    $region3: #{tpu_custom_call.1} parent=1 // loop_header
      %s17 = sphi 0, %s21
      %p18 = scmp.ge.s32.totalorder %s17, 4
      %s27 = sphi 0, %s29
      %s30 = sphi 0, %s27
      %s31 = sphi 0, %s30
      %s47 = sphi 0, %s31
      %s51 = sphi 0, %s51
      %s53 = sphi 0, %s51
      %s54 = sphi 0, %s53
      %s68 = sphi 0, %s54
      %s72 = sphi 0, %s72
      %s74 = sphi 0, %s72
      %s75 = sphi 0, %s74
      %s89 = sphi 0, %s75
      %s93 = sphi 0, %s93
      %s95 = sphi 0, %s93
      %s96 = sphi 0, %s95
      %s110 = sphi 0, %s96
      %s114 = sphi 0, %s114
      %s116 = sphi 0, %s114
      %s117 = sphi 0, %s116
      %s131 = sphi 0, %s117
      %s137 = sphi 0, %s139
      %s140 = sphi 0, %s137
      %s141 = sphi 0, %s140
      %s157 = sphi 0, %s141
    $region4: #{tpu_custom_call.1} parent=1 // loop_header_branch
      %20 = sbr.rel (%p18) target = $region8
    $region5: #{tpu_custom_call.1} parent=1 // loop_body
      %s22 = ssub.s32 %s17, 1
      %s23 = ssub.s32 %s17, 2
      %s24 = sadd.s32 %s17, 1
      %s25 = ssub.s32 %s17, %s24
      %p26 = scmp.eq.s32.totalorder %s25, 0
      %s28 = sadd.s32 %s27, 1
      %s29 = scalar_select %p26, %s27, %s28
      %p32 = pneg %p26
      %p33 = scmp.eq.s32.totalorder %s17, 1
      %p34 = por %p32, %p33
      %p35 = scmp.ne.s32.totalorder %s27, %s30
      %p36 = scmp.eq.s32.totalorder %s17, 0
      %p37 = por %p35, %p36
      %p38 = scmp.ne.s32.totalorder %s27, %s30
      %p39 = scmp.eq.s32.totalorder %s22, 1
      %p40 = por %p38, %p39
      %p41 = scmp.ne.s32.totalorder %s30, %s31
      %p42 = scmp.eq.s32.totalorder %s22, 0
      %p43 = por %p41, %p42
      %p44 = scmp.ne.s32.totalorder %s30, %s31
      %p45 = scmp.eq.s32.totalorder %s23, 1
      %p46 = por %p44, %p45
      %p48 = scmp.ne.s32.totalorder %s31, %s47
      %p49 = scmp.eq.s32.totalorder %s23, 0
      %p50 = por %p48, %p49
      %s52 = sadd.s32 %s51, 1
      %p55 = scmp.eq.s32.totalorder %s17, 1
      %p56 = scmp.ne.s32.totalorder %s51, %s53
      %p57 = scmp.eq.s32.totalorder %s17, 0
      %p58 = por %p56, %p57
      %p59 = scmp.ne.s32.totalorder %s51, %s53
      %p60 = scmp.eq.s32.totalorder %s22, 1
      %p61 = por %p59, %p60
      %p62 = scmp.ne.s32.totalorder %s53, %s54
      %p63 = scmp.eq.s32.totalorder %s22, 0
      %p64 = por %p62, %p63
      %p65 = scmp.ne.s32.totalorder %s53, %s54
      %p66 = scmp.eq.s32.totalorder %s23, 1
      %p67 = por %p65, %p66
      %p69 = scmp.ne.s32.totalorder %s54, %s68
      %p70 = scmp.eq.s32.totalorder %s23, 0
      %p71 = por %p69, %p70
      %s73 = sadd.s32 %s72, 1
      %p76 = scmp.eq.s32.totalorder %s17, 1
      %p77 = scmp.ne.s32.totalorder %s72, %s74
      %p78 = scmp.eq.s32.totalorder %s17, 0
      %p79 = por %p77, %p78
      %p80 = scmp.ne.s32.totalorder %s72, %s74
      %p81 = scmp.eq.s32.totalorder %s22, 1
      %p82 = por %p80, %p81
      %p83 = scmp.ne.s32.totalorder %s74, %s75
      %p84 = scmp.eq.s32.totalorder %s22, 0
      %p85 = por %p83, %p84
      %p86 = scmp.ne.s32.totalorder %s74, %s75
      %p87 = scmp.eq.s32.totalorder %s23, 1
      %p88 = por %p86, %p87
      %p90 = scmp.ne.s32.totalorder %s75, %s89
      %p91 = scmp.eq.s32.totalorder %s23, 0
      %p92 = por %p90, %p91
      %s94 = sadd.s32 %s93, 1
      %p97 = scmp.eq.s32.totalorder %s17, 1
      %p98 = scmp.ne.s32.totalorder %s93, %s95
      %p99 = scmp.eq.s32.totalorder %s17, 0
      %p100 = por %p98, %p99
      %p101 = scmp.ne.s32.totalorder %s93, %s95
      %p102 = scmp.eq.s32.totalorder %s22, 1
      %p103 = por %p101, %p102
      %p104 = scmp.ne.s32.totalorder %s95, %s96
      %p105 = scmp.eq.s32.totalorder %s22, 0
      %p106 = por %p104, %p105
      %p107 = scmp.ne.s32.totalorder %s95, %s96
      %p108 = scmp.eq.s32.totalorder %s23, 1
      %p109 = por %p107, %p108
      %p111 = scmp.ne.s32.totalorder %s96, %s110
      %p112 = scmp.eq.s32.totalorder %s23, 0
      %p113 = por %p111, %p112
      %s115 = sadd.s32 %s114, 1
      %p118 = scmp.eq.s32.totalorder %s17, 1
      %p119 = scmp.ne.s32.totalorder %s114, %s116
      %p120 = scmp.eq.s32.totalorder %s17, 0
      %p121 = por %p119, %p120
      %p122 = scmp.ne.s32.totalorder %s114, %s116
      %p123 = scmp.eq.s32.totalorder %s22, 1
      %p124 = por %p122, %p123
      %p125 = scmp.ne.s32.totalorder %s116, %s117
      %p126 = scmp.eq.s32.totalorder %s22, 0
      %p127 = por %p125, %p126
      %p128 = scmp.ne.s32.totalorder %s116, %s117
      %p129 = scmp.eq.s32.totalorder %s23, 1
      %p130 = por %p128, %p129
      %p132 = scmp.ne.s32.totalorder %s117, %s131
      %p133 = scmp.eq.s32.totalorder %s23, 0
      %p134 = por %p132, %p133
      %s135 = ssub.s32 %s17, %s24
      %p136 = scmp.eq.s32.totalorder %s135, 0
      %s138 = sadd.s32 %s137, 1
      %s139 = scalar_select %p136, %s137, %s138
      %p142 = pneg %p136
      %p143 = scmp.eq.s32.totalorder %s17, 1
      %p144 = por %p142, %p143
      %p145 = scmp.ne.s32.totalorder %s137, %s140
      %p146 = scmp.eq.s32.totalorder %s17, 0
      %p147 = por %p145, %p146
      %p148 = scmp.ne.s32.totalorder %s137, %s140
      %p149 = scmp.eq.s32.totalorder %s22, 1
      %p150 = por %p148, %p149
      %p151 = scmp.ne.s32.totalorder %s140, %s141
      %p152 = scmp.eq.s32.totalorder %s22, 0
      %p153 = por %p151, %p152
      %p154 = scmp.ne.s32.totalorder %s140, %s141
      %p155 = scmp.eq.s32.totalorder %s23, 1
      %p156 = por %p154, %p155
      %p158 = scmp.ne.s32.totalorder %s141, %s157
      %p159 = scmp.eq.s32.totalorder %s23, 0
      %p160 = por %p158, %p159
      %p161 = scmp.le.s32.totalorder 1, %s17
      %p162 = scmp.lt.s32.totalorder %s17, 3
      %p163 = pnand %p161, %p162
      %p164 = pneg %p163
      // Predicated region
      $region9: #{tpu_custom_call.1} parent=5 // pred_check
        _
      $region10: #{tpu_custom_call.1} parent=5 // pred_check_branch
        %166 = sbr.rel (%p163) target = $region12
      $region11: #{tpu_custom_call.1} parent=5 // pred_region
        %s167 = ssub.s32 %s17, 1
        // Predicated region
        $region13: #{tpu_custom_call.1} parent=11 // pred_check
          %p168 = pneg %p64
        $region14: #{tpu_custom_call.1} parent=11 // pred_check_branch
          %170 = sbr.rel (%p168) target = $region16
        $region15: #{tpu_custom_call.1} parent=11 // pred_region
          _
        $region16: #{tpu_custom_call.1} parent=11 // pred_fallthru
          _
        // Predicated region
        $region17: #{tpu_custom_call.1} parent=11 // pred_check
          %p171 = pneg %p85
        $region18: #{tpu_custom_call.1} parent=11 // pred_check_branch
          %173 = sbr.rel (%p171) target = $region20
        $region19: #{tpu_custom_call.1} parent=11 // pred_region
          _
        $region20: #{tpu_custom_call.1} parent=11 // pred_fallthru
          _
        // Predicated region
        $region21: #{tpu_custom_call.1} parent=11 // pred_check
          %p174 = pneg %p106
        $region22: #{tpu_custom_call.1} parent=11 // pred_check_branch
          %176 = sbr.rel (%p174) target = $region24
        $region23: #{tpu_custom_call.1} parent=11 // pred_region
          _
        $region24: #{tpu_custom_call.1} parent=11 // pred_fallthru
          _
        // Predicated region
        $region25: #{tpu_custom_call.1} parent=11 // pred_check
          %p177 = pneg %p127
        $region26: #{tpu_custom_call.1} parent=11 // pred_check_branch
          %179 = sbr.rel (%p177) target = $region28
        $region27: #{tpu_custom_call.1} parent=11 // pred_region
          _
        $region28: #{tpu_custom_call.1} parent=11 // pred_fallthru
          _
      $region12: #{tpu_custom_call.1} parent=5 // pred_fallthru
        _
      %p180 = scmp.lt.s32.totalorder %s17, 2
      // Predicated region
      $region29: #{tpu_custom_call.1} parent=5 // pred_check
        %p181 = pneg %p180
      $region30: #{tpu_custom_call.1} parent=5 // pred_check_branch
        %183 = sbr.rel (%p181) target = $region32
      $region31: #{tpu_custom_call.1} parent=5 // pred_region
        // Predicated region
        $region33: #{tpu_custom_call.1} parent=31 // pred_check
          %p184 = pneg %p37
        $region34: #{tpu_custom_call.1} parent=31 // pred_check_branch
          %186 = sbr.rel (%p184) target = $region36
        $region35: #{tpu_custom_call.1} parent=31 // pred_region
          %s187 = sand.u32 %s27, 1
          %s188 = scalar_lea.sflag [#allocation3], %s187
          %s189 = sand.u32 %s27, 1
          %s190 = smul.addr %s189, 64
          %s191 = scalar_lea.vmem [#allocation2], %s190
          %193 = vsyncadd %s188, 0
          %s194 = smul.addr %s17, 8
          %s195 = smul.addr %s194, 8
          %s196 = scalar_lea.hbm %s0, %s195
          %s197 = sshll.u32 %s196, 4
          %s198 = int_to_ptr.hbm [resolvable:$true] %s197
          %s199 = sshll.u32 %s191, 4
          %s200 = int_to_ptr.vmem [resolvable:$true] %s199
          %205 = dma.hbm_to_vmem [thread:$0]  %s198, 1024, %s200, %s188, 256, 256, 16
        $region36: #{tpu_custom_call.1} parent=31 // pred_fallthru
          _
      $region32: #{tpu_custom_call.1} parent=5 // pred_fallthru
        _
      %p206 = scmp.le.s32.totalorder 1, %s17
      %p207 = scmp.lt.s32.totalorder %s17, 3
      %p208 = pnand %p206, %p207
      %p209 = pneg %p208
      // Predicated region
      $region37: #{tpu_custom_call.1} parent=5 // pred_check
        _
      $region38: #{tpu_custom_call.1} parent=5 // pred_check_branch
        %211 = sbr.rel (%p208) target = $region40
      $region39: #{tpu_custom_call.1} parent=5 // pred_region
        %s212 = ssub.s32 %s17, 1
        %s213 = sand.u32 %s30, 1
        %s214 = scalar_lea.sflag [#allocation3], %s213
        %s215 = sand.u32 %s30, 1
        %s216 = smul.addr %s215, 64
        %s217 = scalar_lea.vmem [#allocation2], %s216
        // Predicated region
        $region41: #{tpu_custom_call.1} parent=39 // pred_check
          %p218 = pneg %p43
        $region42: #{tpu_custom_call.1} parent=39 // pred_check_branch
          %220 = sbr.rel (%p218) target = $region44
        $region43: #{tpu_custom_call.1} parent=39 // pred_region
          %222 = dma.done %s214, 1024
        $region44: #{tpu_custom_call.1} parent=39 // pred_fallthru
          _
        %s223 = sand.u32 %s30, 1
        %s224 = scalar_lea.sflag [#allocation3], %s223
        %s225 = sand.u32 %s30, 1
        %s226 = smul.addr %s225, 64
        %s227 = scalar_lea.vmem [#allocation2], %s226
        %p228 = pneg %p43
        %p229 = pneg %p40
        %p230 = pneg %p64
        %p231 = pneg %p61
        %p232 = pneg %p85
        %p233 = pneg %p82
        %p234 = pneg %p106
        %p235 = pneg %p103
        %p236 = pneg %p127
        %p237 = pneg %p124
        %p238 = pneg %p153
        %p239 = pneg %p150
        %s240 = sand.u32 %s140, 1
        %s241 = scalar_lea.sflag [#allocation4], %s240
        %s242 = sand.u32 %s140, 1
        %s243 = smul.addr %s242, 64
        %s244 = scalar_lea.vmem [#allocation5], %s243
        %v245 = vld [vmem:[%s217] sm:$0xff]
        %v246 = vld [vmem:[%s217 + $0x8] sm:$0xff]
        %v247 = vld [vmem:[%s217 + $0x10] sm:$0xff]
        %v248 = vld [vmem:[%s217 + $0x18] sm:$0xff]
        %v249 = vld [vmem:[%s217 + $0x20] sm:$0xff]
        %v250 = vld [vmem:[%s217 + $0x28] sm:$0xff]
        %v251 = vld [vmem:[%s217 + $0x30] sm:$0xff]
        %v252 = vld [vmem:[%s217 + $0x38] sm:$0xff]
        %v253 = vadd.f32 %v245, %v246
        %254 = vadd.xlane.f32.xlu0 %v253
        %v255 = vpop.xlane.xlu0 %254
        %v256 = vadd.f32 %v247, %v248
        %257 = vadd.xlane.f32.xlu0 %v256
        %v258 = vpop.xlane.xlu0 %257
        %v259 = vadd.f32 %v249, %v250
        %260 = vadd.xlane.f32.xlu0 %v259
        %v261 = vpop.xlane.xlu0 %260
        %v262 = vadd.f32 %v251, %v252
        %263 = vadd.xlane.f32.xlu0 %v262
        %v264 = vpop.xlane.xlu0 %263
        %v265 = vmul.f32 %v255, 0.00390625
        %v266 = vmul.f32 %v258, 0.00390625
        %v267 = vmul.f32 %v261, 0.00390625
        %v268 = vmul.f32 %v264, 0.00390625
        %v269 = vld [vmem:[%s1] sm:$0x3]
        %v274 = vlaneseq
        %v275 = vand.u32 %v274, 127
        %v276 = vperm.slane %v265, %v275
        %v277 = vadd.s32 %v275, 4294967288
        %v278 = vperm.slane %v266, %v277
        %vm279 = vcmask 130112
        %v280 = vsel %vm279, %v278, %v276
        %v281 = vadd.s32 %v275, 4294967280
        %v282 = vperm.slane %v267, %v281
        %vm283 = vcmask 195712
        %v284 = vsel %vm283, %v282, %v280
        %v285 = vadd.s32 %v275, 4294967272
        %v286 = vperm.slane %v268, %v285
        %vm287 = vcmask 261312
        %v288 = vsel %vm287, %v286, %v284
        %v290 = vmul.f32 %v269, %v288
        %vm291 = vcmask 254976
        %v292 = vsel %vm291, %v290, 0.0
        %293 = vadd.xlane.f32.xlu0 %v292
        %v294 = vpop.xlane.xlu0 %293
        %v295 = vld [vmem:[%s2] sm:$0x1]
        %v297 = vperm.slane %v295, 0
        %v298 = vlaneseq
        %v299 = vshrl.u32 %v298, 7
        %301 = vset.pattern.permute.xlu0 %v299
        %302 = vperm.xlu0 %301, %v297
        %v303 = vpop.permute.xlu0 %302
        %v305 = vadd.f32 %v294, %v303
        %v306 = vmax.f32 %v305, 0.0
        %v307 = vld [vmem:[%s3] sm:$0xff]
        %v308 = vld [vmem:[%s3 + $0x8] sm:$0xff]
        %v309 = vld [vmem:[%s3 + $0x10] sm:$0xff]
        %v310 = vld [vmem:[%s3 + $0x18] sm:$0xff]
        %312 = vset.pattern.permute.xlu0 0
        %313 = vperm.xlu0 %312, %v306
        %v314 = vpop.permute.xlu0 %313
        %v315 = vperm.slane %v314, %v275
        %vm316 = vcmask 1042434
        %v317 = vsel %vm316, %v315, %v315
        %vm318 = vcmask 1043459
        %v319 = vsel %vm318, %v315, %v317
        %vm320 = vcmask 1044484
        %v321 = vsel %vm320, %v315, %v319
        %vm322 = vcmask 1045509
        %v323 = vsel %vm322, %v315, %v321
        %vm324 = vcmask 1046534
        %v325 = vsel %vm324, %v315, %v323
        %vm326 = vcmask 1047559
        %v327 = vsel %vm326, %v315, %v325
        %v329 = vmul.f32 %v307, %v327
        %v330 = vmul.f32 %v308, %v327
        %v331 = vmul.f32 %v309, %v327
        %v332 = vmul.f32 %v310, %v327
        %vm333 = vcmask 15360
        %v334 = vsel %vm333, %v329, 0.0
        %335 = vadd.xlane.f32.xlu0 %v334
        %v336 = vpop.xlane.xlu0 %335
        %v337 = vsel %vm333, %v330, 0.0
        %338 = vadd.xlane.f32.xlu0 %v337
        %v339 = vpop.xlane.xlu0 %338
        %v340 = vsel %vm333, %v331, 0.0
        %341 = vadd.xlane.f32.xlu0 %v340
        %v342 = vpop.xlane.xlu0 %341
        %v343 = vsel %vm333, %v332, 0.0
        %344 = vadd.xlane.f32.xlu0 %v343
        %v345 = vpop.xlane.xlu0 %344
        %v346 = vld [vmem:[%s4] sm:$0x1]
        %v348 = vperm.slane %v346, 0
        %v349 = vlaneseq
        %v350 = vshrl.u32 %v349, 7
        %352 = vset.pattern.permute.xlu0 %v350
        %353 = vperm.xlu0 %352, %v348
        %v354 = vpop.permute.xlu0 %353
        %v355 = vlaneseq
        %v356 = vshrl.u32 %v355, 7
        %v357 = vadd.s32 %v356, 8
        %358 = vset.pattern.permute.xlu0 %v357
        %359 = vperm.xlu0 %358, %v348
        %v360 = vpop.permute.xlu0 %359
        %v361 = vlaneseq
        %v362 = vshrl.u32 %v361, 7
        %v363 = vadd.s32 %v362, 16
        %364 = vset.pattern.permute.xlu0 %v363
        %365 = vperm.xlu0 %364, %v348
        %v366 = vpop.permute.xlu0 %365
        %v367 = vlaneseq
        %v368 = vshrl.u32 %v367, 7
        %v369 = vadd.s32 %v368, 24
        %370 = vset.pattern.permute.xlu0 %v369
        %371 = vperm.xlu0 %370, %v348
        %v372 = vpop.permute.xlu0 %371
        %v377 = vadd.f32 %v336, %v354
        %v378 = vadd.f32 %v339, %v360
        %v379 = vadd.f32 %v342, %v366
        %v380 = vadd.f32 %v345, %v372
        %v381 = vmul.f32 %v377, 0.5
        %v382 = vmul.f32 %v378, 0.5
        %v383 = vmul.f32 %v379, 0.5
        %v384 = vmul.f32 %v380, 0.5
        %v385 = vtanh.pop %v381
        %v386 = vtanh.pop %v382
        %v387 = vtanh.pop %v383
        %v388 = vtanh.pop %v384
        %v389 = vmul.f32 %v385, 0.5
        %v390 = vmul.f32 %v386, 0.5
        %v391 = vmul.f32 %v387, 0.5
        %v392 = vmul.f32 %v388, 0.5
        %v393 = vadd.f32 %v389, 0.5
        %v394 = vadd.f32 %v390, 0.5
        %v395 = vadd.f32 %v391, 0.5
        %v396 = vadd.f32 %v392, 0.5
        %398 = vset.pattern.permute.xlu0 0
        %399 = vperm.xlu0 %398, %v393
        %v400 = vpop.permute.xlu0 %399
        %403 = vset.pattern.permute.xlu0 0
        %404 = vperm.xlu0 %403, %v394
        %v405 = vpop.permute.xlu0 %404
        %408 = vset.pattern.permute.xlu0 0
        %409 = vperm.xlu0 %408, %v395
        %v410 = vpop.permute.xlu0 %409
        %413 = vset.pattern.permute.xlu0 0
        %414 = vperm.xlu0 %413, %v396
        %v415 = vpop.permute.xlu0 %414
        %v417 = vmul.f32 %v245, %v400
        %v418 = vmul.f32 %v246, %v400
        %v419 = vmul.f32 %v247, %v405
        %v420 = vmul.f32 %v248, %v405
        %v421 = vmul.f32 %v249, %v410
        %v422 = vmul.f32 %v250, %v410
        %v423 = vmul.f32 %v251, %v415
        %v424 = vmul.f32 %v252, %v415
        %425 = vst [vmem:[%s244] sm:$0xff] %v417
        %426 = vst [vmem:[%s244 + $0x8] sm:$0xff] %v418
        %427 = vst [vmem:[%s244 + $0x10] sm:$0xff] %v419
        %428 = vst [vmem:[%s244 + $0x18] sm:$0xff] %v420
        %429 = vst [vmem:[%s244 + $0x20] sm:$0xff] %v421
        %430 = vst [vmem:[%s244 + $0x28] sm:$0xff] %v422
        %431 = vst [vmem:[%s244 + $0x30] sm:$0xff] %v423
        %432 = vst [vmem:[%s244 + $0x38] sm:$0xff] %v424
        %s433 = sand.u32 %s140, 1
        %s434 = scalar_lea.sflag [#allocation4], %s433
        %s435 = sand.u32 %s140, 1
        %s436 = smul.addr %s435, 64
        %s437 = scalar_lea.vmem [#allocation5], %s436
        // Predicated region
        $region45: #{tpu_custom_call.1} parent=39 // pred_check
          %p438 = pneg %p150
        $region46: #{tpu_custom_call.1} parent=39 // pred_check_branch
          %440 = sbr.rel (%p438) target = $region48
        $region47: #{tpu_custom_call.1} parent=39 // pred_region
          %442 = vsyncadd %s434, 0
          %s443 = smul.addr %s22, 8
          %s444 = smul.addr %s443, 8
          %s445 = scalar_lea.hbm %s5, %s444
          %s446 = sshll.u32 %s437, 4
          %s447 = int_to_ptr.vmem [resolvable:$true] %s446
          %s448 = sshll.u32 %s445, 4
          %s449 = int_to_ptr.hbm [resolvable:$true] %s448
          %454 = dma.vmem_to_hbm [thread:$0]  %s447, 1024, %s449, %s434, 256, 256, 16
        $region48: #{tpu_custom_call.1} parent=39 // pred_fallthru
          _
      $region40: #{tpu_custom_call.1} parent=5 // pred_fallthru
        _
      %p455 = scmp.le.s32.totalorder 2, %s17
      // Predicated region
      $region49: #{tpu_custom_call.1} parent=5 // pred_check
        %p456 = pneg %p455
      $region50: #{tpu_custom_call.1} parent=5 // pred_check_branch
        %458 = sbr.rel (%p456) target = $region52
      $region51: #{tpu_custom_call.1} parent=5 // pred_region
        %s459 = ssub.s32 %s17, 2
        // Predicated region
        $region53: #{tpu_custom_call.1} parent=51 // pred_check
          %p460 = pneg %p156
        $region54: #{tpu_custom_call.1} parent=51 // pred_check_branch
          %462 = sbr.rel (%p460) target = $region56
        $region55: #{tpu_custom_call.1} parent=51 // pred_region
          %s463 = sand.u32 %s141, 1
          %s464 = scalar_lea.sflag [#allocation4], %s463
          %s465 = sand.u32 %s141, 1
          %s466 = smul.addr %s465, 64
          %s467 = scalar_lea.vmem [#allocation5], %s466
          %469 = dma.done %s464, 1024
        $region56: #{tpu_custom_call.1} parent=51 // pred_fallthru
          _
      $region52: #{tpu_custom_call.1} parent=5 // pred_fallthru
        _
    $region6: #{tpu_custom_call.1} parent=1 // loop_footer
      %s21 = sadd.s32 1, %s17
    $region7: #{tpu_custom_call.1} parent=1 // loop_footer_branch
      %16 = sbr.rel target = $region3
    $region8: #{tpu_custom_call.1} parent=1 // loop_exit
      _
    %470 = vsyncpa [#allocation3], 1
    %s471 = scalar_lea.sflag [#allocation3], 1
    %472 = vsyncpa %s471, 1
    %473 = vsyncpa [#allocation4], 1
    %s474 = scalar_lea.sflag [#allocation4], 1
    %475 = vsyncpa %s474, 1

</llo_original>
